<compile_context>
chip_gen: v5e
topology: v5e:2x2
jax: 0.10.0
libtpu: 0.0.40
codegen_flags: <defaults>
</compile_context>

<pallas_src>
import functools

import jax
import jax.numpy as jnp
from jax.experimental import pallas as pl
from jax.experimental.pallas import tpu as pltpu


def _ce_kernel(x_ref, t_ref, o_ref, *, n_rows, tile_n):
    """One grid step: NLL for `tile_n` rows (padded rows write exactly 0).

    x_ref: (tile_n, C)     logits block (any float dtype; upcast to f32)
    t_ref: (1, 1, tile_n)  int32 targets, lane-major
    o_ref: (1, 1, tile_n)  f32 per-row NLL, lane-major
    """
    x = x_ref[...].astype(jnp.float32)                      # (tile_n, C)

    # Lane-major targets -> per-row column via one small XLU transpose.
    t_col = jnp.transpose(t_ref[0])                         # (tile_n, 1) int32

    # log-sum-exp along the class (lane) axis: one exp/element, one log/row.
    m = jnp.max(x, axis=1, keepdims=True)                   # (tile_n, 1)
    shifted = x - m
    lse = jnp.log(jnp.sum(jnp.exp(shifted), axis=1, keepdims=True))

    # Shifted logit of the target class, without materializing log-probs.
    cls = jax.lax.broadcasted_iota(jnp.int32, shifted.shape, 1)
    picked = jnp.sum(jnp.where(cls == t_col, shifted, 0.0), axis=1, keepdims=True)

    nll = lse - picked                                       # (tile_n, 1)

    # Zero rows past the true batch size (trailing partial tile / padding).
    row = (jax.lax.broadcasted_iota(jnp.int32, (tile_n, 1), 0)
           + pl.program_id(0) * tile_n)
    nll = jnp.where(row < n_rows, nll, 0.0)

    o_ref[0] = jnp.transpose(nll)                            # lane-dense (1, tile_n)


def _vmem_capacity_bytes():
    """Physical VMEM of the current TPU generation (fallback: 128 MiB)."""
    try:
        info = pltpu.get_tpu_info()
        cap = getattr(info, "vmem_capacity_bytes", None)
        if cap:
            return int(cap)
    except Exception:
        pass
    return 128 * 2 ** 20


def _pick_tile_n(n, c, itemsize, vmem_cap):
    """Rows per tile: big enough to amortize ~0.35us/grid-step, small enough to
    double-buffer in VMEM, and capped near N/2 so both v7x TensorCores get work."""
    row_bytes = max(1, c * itemsize)
    if vmem_cap <= 64 * 2 ** 20:          # v7x-class: 64 MiB physical VMEM
        logits_target = 8 * 2 ** 20
    else:                                  # v5e / v6e: 128 MiB physical VMEM
        logits_target = 16 * 2 ** 20
    t = (logits_target // row_bytes) // 8 * 8
    half_n = ((pl.cdiv(n, 2) + 7) // 8) * 8    # keep the grid >= 2 steps
    t = min(t, half_n)
    return int(max(8, t))


@functools.partial(jax.jit, static_argnames=("size_average", "tile_n"))
def cross_entropy_loss(logits, targets, *, size_average=True, tile_n=None):
    n, c = logits.shape
    # PyTorch does targets.long().view(-1); int32 class indices are sufficient.
    targets = targets.reshape(-1).astype(jnp.int32)

    itemsize = jnp.dtype(logits.dtype).itemsize
    vmem_cap = _vmem_capacity_bytes()
    if tile_n is None:
        tile_n = _pick_tile_n(n, c, itemsize, vmem_cap)
    assert tile_n >= 8 and tile_n % 8 == 0, "tile_n must be a positive multiple of 8"

    num_tiles = pl.cdiv(n, tile_n)
    n_pad = num_tiles * tile_n

    # Lane-major targets; padding rows get -1 (they select no class and the
    # kernel's row-validity mask zeroes them regardless).
    t_lanes = jnp.pad(targets, (0, n_pad - n), constant_values=-1)
    t_lanes = t_lanes.reshape(num_tiles, 1, tile_n)

    # VMEM budget: the double-buffered logits block dominates. Leave headroom
    # and stay well under physical VMEM on every generation.
    logits_block = tile_n * c * itemsize
    aux_block = 2 * (tile_n * 4)                 # int32 targets + f32 output lanes
    want = int(2.5 * logits_block) + 2 * aux_block + (2 << 20)
    hard_cap = 48 * 2 ** 20 if vmem_cap <= 64 * 2 ** 20 else 100 * 2 ** 20
    vmem_limit = int(min(hard_cap, max(16 * 2 ** 20, want)))

    kernel = functools.partial(_ce_kernel, n_rows=n, tile_n=tile_n)

    per_row = pl.pallas_call(
        kernel,
        out_shape=jax.ShapeDtypeStruct((num_tiles, 1, tile_n), jnp.float32),
        grid_spec=pltpu.PrefetchScalarGridSpec(
            num_scalar_prefetch=0,
            grid=(num_tiles,),
            in_specs=[
                pl.BlockSpec((tile_n, c), lambda i: (i, 0)),
                pl.BlockSpec((1, 1, tile_n), lambda i: (i, 0, 0)),
            ],
            out_specs=pl.BlockSpec((1, 1, tile_n), lambda i: (i, 0, 0)),
        ),
        compiler_params=pltpu.CompilerParams(
            dimension_semantics=("parallel",),   # independent per-tile outputs
            vmem_limit_bytes=vmem_limit,
        ),
    )(logits, t_lanes)

    loss = jnp.sum(per_row)                      # padded rows contribute exactly 0
    return loss / n if size_average else loss


def _reference(logits, targets, size_average=True):
    logp = jax.nn.log_softmax(logits.astype(jnp.float32), axis=1)
    nll = -logp[jnp.arange(logits.shape[0]), targets]
    return nll.mean() if size_average else nll.sum()


if __name__ == "__main__":
    key = jax.random.PRNGKey(0)
    k1, k2, k3, k4 = jax.random.split(key, 4)

    N, C = 16, 32
    logits = jax.random.normal(k1, (N, C), dtype=jnp.float32)
    targets = jax.random.randint(k2, (N,), 0, C, dtype=jnp.int32)

    out = jax.block_until_ready(cross_entropy_loss(logits, targets, size_average=True))
    ref = _reference(logits, targets, size_average=True)
    assert jnp.allclose(out, ref, rtol=1e-5, atol=1e-5), (out, ref)

    out2 = jax.block_until_ready(cross_entropy_loss(logits, targets, size_average=False))
    ref2 = _reference(logits, targets, size_average=False)
    assert jnp.allclose(out2, ref2, rtol=1e-5, atol=1e-5), (out2, ref2)

    # explicit multi-tile path (grid > 1)
    out3 = jax.block_until_ready(
        cross_entropy_loss(logits, targets, size_average=True, tile_n=8)
    )
    assert jnp.allclose(out3, ref, rtol=1e-5, atol=1e-5), (out3, ref)

    # non-divisible N exercises the cdiv grid + in-kernel tail masking
    N2 = 20
    logits2 = jax.random.normal(k3, (N2, C), dtype=jnp.float32)
    targets2 = jax.random.randint(k4, (N2,), 0, C, dtype=jnp.int32)
    ref4 = _reference(logits2, targets2, size_average=True)
    out4 = jax.block_until_ready(cross_entropy_loss(logits2, targets2))          # auto tile
    out5 = jax.block_until_ready(cross_entropy_loss(logits2, targets2, tile_n=8))  # tail tile of 4
    assert jnp.allclose(out4, ref4, rtol=1e-5, atol=1e-5), (out4, ref4)
    assert jnp.allclose(out5, ref4, rtol=1e-5, atol=1e-5), (out5, ref4)

    print("KERNEL_OK")
</pallas_src>

<mosaic_0001>
module attributes {stable_mosaic.version = 11 : i64} {
  func.func @_ce_kernel(%arg0: i32, %arg1: memref<8x32xf32, #tpu.memory_space<vmem>>, %arg2: memref<1x1x8xi32, #tpu.memory_space<vmem>>, %arg3: memref<1x1x8xf32, #tpu.memory_space<vmem>>) attributes {dimension_semantics = [#tpu.dimension_semantics<parallel>], iteration_bounds = array<i64: 2>, scalar_prefetch = 0 : i64, scratch_operands = 0 : i64, tpu.core_type = #tpu.core_type<tc>, window_params = [{transform_indices = @transform_0, window_bounds = array<i64: 8, 32>}, {transform_indices = @transform_1, window_bounds = array<i64: 1, 1, 8>}, {transform_indices = @transform_2, window_bounds = array<i64: 1, 1, 8>}]} {
    %c0 = arith.constant 0 : index
    %c0_0 = arith.constant 0 : index
    %0 = vector.load %arg1[%c0, %c0_0] : memref<8x32xf32, #tpu.memory_space<vmem>>, vector<8x32xf32>
    %c0_1 = arith.constant 0 : index
    %c0_2 = arith.constant 0 : index
    %c0_3 = arith.constant 0 : index
    %1 = vector.load %arg2[%c0_1, %c0_2, %c0_3] : memref<1x1x8xi32, #tpu.memory_space<vmem>>, vector<1x1x8xi32>
    %2 = vector.shape_cast %1 : vector<1x1x8xi32> to vector<1x8xi32>
    %3 = tpu.transpose %2, [1, 0] : vector<1x8xi32> -> vector<8x1xi32>
    %cst = arith.constant dense<0xFF800000> : vector<8xf32>
    %4 = vector.multi_reduction <maximumf>, %0, %cst [1] : vector<8x32xf32> to vector<8xf32>
    %5 = vector.shape_cast %4 : vector<8xf32> to vector<8x1xf32>
    %6 = vector.broadcast %5 : vector<8x1xf32> to vector<8x32xf32>
    %7 = arith.subf %0, %6 : vector<8x32xf32>
    %8 = math.exp %7 : vector<8x32xf32>
    %cst_4 = arith.constant dense<0.000000e+00> : vector<8xf32>
    %9 = vector.multi_reduction <add>, %8, %cst_4 [1] : vector<8x32xf32> to vector<8xf32>
    %10 = vector.shape_cast %9 : vector<8xf32> to vector<8x1xf32>
    %11 = math.log %10 : vector<8x1xf32>
    %12 = tpu.iota {dimensions = array<i32: 1>} : vector<8x32xi32>
    %13 = vector.broadcast %3 : vector<8x1xi32> to vector<8x32xi32>
    %14 = arith.cmpi eq, %12, %13 : vector<8x32xi32>
    %cst_5 = arith.constant 0.000000e+00 : f32
    %15 = vector.broadcast %cst_5 : f32 to vector<8x32xf32>
    %16 = arith.select %14, %7, %15 : vector<8x32xi1>, vector<8x32xf32>
    %cst_6 = arith.constant dense<0.000000e+00> : vector<8xf32>
    %17 = vector.multi_reduction <add>, %16, %cst_6 [1] : vector<8x32xf32> to vector<8xf32>
    %18 = vector.shape_cast %17 : vector<8xf32> to vector<8x1xf32>
    %19 = arith.subf %11, %18 : vector<8x1xf32>
    %20 = tpu.iota {dimensions = array<i32: 0>} : vector<8x1xi32>
    %c8_i32 = arith.constant 8 : i32
    %21 = arith.muli %arg0, %c8_i32 : i32
    %22 = vector.broadcast %21 : i32 to vector<8x1xi32>
    %23 = arith.addi %20, %22 : vector<8x1xi32>
    %c16_i32 = arith.constant 16 : i32
    %24 = vector.broadcast %c16_i32 : i32 to vector<8x1xi32>
    %25 = arith.cmpi slt, %23, %24 : vector<8x1xi32>
    %cst_7 = arith.constant 0.000000e+00 : f32
    %26 = vector.broadcast %cst_7 : f32 to vector<8x1xf32>
    %27 = arith.select %25, %19, %26 : vector<8x1xi1>, vector<8x1xf32>
    %28 = tpu.transpose %27, [1, 0] : vector<8x1xf32> -> vector<1x8xf32>
    %c0_8 = arith.constant 0 : index
    %c0_9 = arith.constant 0 : index
    %c0_10 = arith.constant 0 : index
    %29 = vector.load %arg3[%c0_8, %c0_9, %c0_10] : memref<1x1x8xf32, #tpu.memory_space<vmem>>, vector<1x1x8xf32>
    %30 = vector.shape_cast %29 : vector<1x1x8xf32> to vector<1x8xf32>
    %31 = vector.shape_cast %28 : vector<1x8xf32> to vector<1x1x8xf32>
    tpu.vector_store %arg3[%c0_8, %c0_9, %c0_10], %31 {strides = array<i32>} : memref<1x1x8xf32, #tpu.memory_space<vmem>>, vector<1x1x8xf32>,
    return
  }
  func.func @transform_0(%arg0: i32) -> (i32, i32) {
    %c0_i32 = arith.constant 0 : i32
    %c0_i32_0 = arith.constant 0 : i32
    return %arg0, %c0_i32 : i32, i32
  }
  func.func @transform_1(%arg0: i32) -> (i32, i32, i32) {
    %c0_i32 = arith.constant 0 : i32
    %c0_i32_0 = arith.constant 0 : i32
    %c0_i32_1 = arith.constant 0 : i32
    return %arg0, %c0_i32, %c0_i32_0 : i32, i32, i32
  }
  func.func @transform_2(%arg0: i32) -> (i32, i32, i32) {
    %c0_i32 = arith.constant 0 : i32
    %c0_i32_0 = arith.constant 0 : i32
    %c0_i32_1 = arith.constant 0 : i32
    return %arg0, %c0_i32, %c0_i32_0 : i32, i32, i32
  }
}

</mosaic_0001>

<llo_original>
// kernel: cross_entropy_loss.1
$region0: #{cross_entropy_loss.1}
  #allocation0 [shape = 'u32[]', space=smem, size = 0x4, offset = 0x4, fixed_abs, tag = 'smem constant byte address 0x4 - core index']
  #allocation1 [shape = 'u32[72,128]{1,0:T(1,128)}', space=vmem, size = 0x9000, scoped, tag = 'internal scratch']
  %s0 = inlined_call_operand.hbm [shape: f32[16,32], index: 0, kind: input, shape index: {}]
  %s1 = inlined_call_operand.vmem [shape: s32[2,1,8], index: 1, kind: input, shape index: {}]
  %s2 = inlined_call_operand.vmem [shape: f32[2,1,8], index: 2, kind: output, shape index: {}]
  %s3 = sld [smem:[#allocation0]]
  $region45: #{cross_entropy_loss.1} parent=0
    _
  %s5 = ssub.s32 1, %s3
  %s6 = scalar_select 0, %s5, %s3
  $region1: #{cross_entropy_loss.1} parent=0
    #allocation2 [shape = 'u8[8192]{0}', space=vmem, size = 0x2000, scoped, tag = 'input window, operand 0']
    #allocation3 [shape = 's32[2]{0}', space=sflag, size = 0x8, scoped, tag = 'scoped memory for cross_entropy_loss.1']
    %7 = vsyncpa [#allocation3], 0
    %s8 = scalar_lea.sflag [#allocation3], 1
    %9 = vsyncpa %s8, 0
    loop: start=0, step=1, limit=4
    $region2: #{cross_entropy_loss.1} parent=1 // loop_pre_header
      _
    $region3: #{cross_entropy_loss.1} parent=1 // loop_header
      %s11 = sphi 0, %s15
      %p12 = scmp.ge.s32.totalorder %s11, 4
      %s21 = sphi 0, %s23
      %s24 = sphi 0, %s21
      %s25 = sphi 0, %s24
      %s41 = sphi 0, %s25
      %s47 = sphi 0, %s49
      %s50 = sphi 0, %s47
      %s51 = sphi 0, %s50
      %s67 = sphi 0, %s51
      %s73 = sphi 0, %s75
      %s76 = sphi 0, %s73
      %s77 = sphi 0, %s76
      %s93 = sphi 0, %s77
    $region4: #{cross_entropy_loss.1} parent=1 // loop_header_branch
      %14 = sbr.rel (%p12) target = $region8
    $region5: #{cross_entropy_loss.1} parent=1 // loop_body
      %s16 = ssub.s32 %s11, 1
      %s17 = ssub.s32 %s11, 2
      %s18 = sadd.s32 %s11, 1
      %s19 = ssub.s32 %s11, %s18
      %p20 = scmp.eq.s32.totalorder %s19, 0
      %s22 = sadd.s32 %s21, 1
      %s23 = scalar_select %p20, %s21, %s22
      %p26 = pneg %p20
      %p27 = scmp.eq.s32.totalorder %s11, 1
      %p28 = por %p26, %p27
      %p29 = scmp.ne.s32.totalorder %s21, %s24
      %p30 = scmp.eq.s32.totalorder %s11, 0
      %p31 = por %p29, %p30
      %p32 = scmp.ne.s32.totalorder %s21, %s24
      %p33 = scmp.eq.s32.totalorder %s16, 1
      %p34 = por %p32, %p33
      %p35 = scmp.ne.s32.totalorder %s24, %s25
      %p36 = scmp.eq.s32.totalorder %s16, 0
      %p37 = por %p35, %p36
      %p38 = scmp.ne.s32.totalorder %s24, %s25
      %p39 = scmp.eq.s32.totalorder %s17, 1
      %p40 = por %p38, %p39
      %p42 = scmp.ne.s32.totalorder %s25, %s41
      %p43 = scmp.eq.s32.totalorder %s17, 0
      %p44 = por %p42, %p43
      %s45 = ssub.s32 %s11, %s18
      %p46 = scmp.eq.s32.totalorder %s45, 0
      %s48 = sadd.s32 %s47, 1
      %s49 = scalar_select %p46, %s47, %s48
      %p52 = pneg %p46
      %p53 = scmp.eq.s32.totalorder %s11, 1
      %p54 = por %p52, %p53
      %p55 = scmp.ne.s32.totalorder %s47, %s50
      %p56 = scmp.eq.s32.totalorder %s11, 0
      %p57 = por %p55, %p56
      %p58 = scmp.ne.s32.totalorder %s47, %s50
      %p59 = scmp.eq.s32.totalorder %s16, 1
      %p60 = por %p58, %p59
      %p61 = scmp.ne.s32.totalorder %s50, %s51
      %p62 = scmp.eq.s32.totalorder %s16, 0
      %p63 = por %p61, %p62
      %p64 = scmp.ne.s32.totalorder %s50, %s51
      %p65 = scmp.eq.s32.totalorder %s17, 1
      %p66 = por %p64, %p65
      %p68 = scmp.ne.s32.totalorder %s51, %s67
      %p69 = scmp.eq.s32.totalorder %s17, 0
      %p70 = por %p68, %p69
      %s71 = ssub.s32 %s11, %s18
      %p72 = scmp.eq.s32.totalorder %s71, 0
      %s74 = sadd.s32 %s73, 1
      %s75 = scalar_select %p72, %s73, %s74
      %p78 = pneg %p72
      %p79 = scmp.eq.s32.totalorder %s11, 1
      %p80 = por %p78, %p79
      %p81 = scmp.ne.s32.totalorder %s73, %s76
      %p82 = scmp.eq.s32.totalorder %s11, 0
      %p83 = por %p81, %p82
      %p84 = scmp.ne.s32.totalorder %s73, %s76
      %p85 = scmp.eq.s32.totalorder %s16, 1
      %p86 = por %p84, %p85
      %p87 = scmp.ne.s32.totalorder %s76, %s77
      %p88 = scmp.eq.s32.totalorder %s16, 0
      %p89 = por %p87, %p88
      %p90 = scmp.ne.s32.totalorder %s76, %s77
      %p91 = scmp.eq.s32.totalorder %s17, 1
      %p92 = por %p90, %p91
      %p94 = scmp.ne.s32.totalorder %s77, %s93
      %p95 = scmp.eq.s32.totalorder %s17, 0
      %p96 = por %p94, %p95
      %p97 = scmp.le.s32.totalorder 1, %s11
      %p98 = scmp.lt.s32.totalorder %s11, 3
      %p99 = pnand %p97, %p98
      %p100 = pneg %p99
      // Predicated region
      $region9: #{cross_entropy_loss.1} parent=5 // pred_check
        _
      $region10: #{cross_entropy_loss.1} parent=5 // pred_check_branch
        %102 = sbr.rel (%p99) target = $region12
      $region11: #{cross_entropy_loss.1} parent=5 // pred_region
        %s103 = ssub.s32 %s11, 1
      $region12: #{cross_entropy_loss.1} parent=5 // pred_fallthru
        _
      %p104 = scmp.lt.s32.totalorder %s11, 2
      // Predicated region
      $region13: #{cross_entropy_loss.1} parent=5 // pred_check
        %p105 = pneg %p104
      $region14: #{cross_entropy_loss.1} parent=5 // pred_check_branch
        %107 = sbr.rel (%p105) target = $region16
      $region15: #{cross_entropy_loss.1} parent=5 // pred_region
        // Predicated region
        $region17: #{cross_entropy_loss.1} parent=15 // pred_check
          %p108 = pneg %p31
        $region18: #{cross_entropy_loss.1} parent=15 // pred_check_branch
          %110 = sbr.rel (%p108) target = $region20
        $region19: #{cross_entropy_loss.1} parent=15 // pred_region
          %s111 = sand.u32 %s21, 1
          %s112 = scalar_lea.sflag [#allocation3], %s111
          %s113 = sand.u32 %s21, 1
          %s114 = smul.addr %s113, 8
          %s115 = scalar_lea.vmem [#allocation2], %s114
          %117 = vsyncadd %s112, 0
          %s118 = smul.addr %s11, 8
          %s119 = scalar_lea.hbm %s0, %s118
          %s121 = sshll.u32 %s119, 4
          %s122 = int_to_ptr.hbm [resolvable:$true] %s121
          %s123 = sshll.u32 %s115, 4
          %s124 = int_to_ptr.vmem [resolvable:$true] %s123
          %126 = dma.hbm_to_vmem [thread:$0]  %s122, 128, %s124, %s112
        $region20: #{cross_entropy_loss.1} parent=15 // pred_fallthru
          _
        // Predicated region
        $region21: #{cross_entropy_loss.1} parent=15 // pred_check
          %p127 = pneg %p57
        $region22: #{cross_entropy_loss.1} parent=15 // pred_check_branch
          %129 = sbr.rel (%p127) target = $region24
        $region23: #{cross_entropy_loss.1} parent=15 // pred_region
          %p130 = scmp.lt.s32.totalorder %s11, 1
          %s131 = scalar_select %p130, %s11, 1
          %s132 = scalar_lea.vmem %s1, %s131
        $region24: #{cross_entropy_loss.1} parent=15 // pred_fallthru
          _
      $region16: #{cross_entropy_loss.1} parent=5 // pred_fallthru
        _
      %p133 = scmp.le.s32.totalorder 1, %s11
      %p134 = scmp.lt.s32.totalorder %s11, 3
      %p135 = pnand %p133, %p134
      %p136 = pneg %p135
      // Predicated region
      $region25: #{cross_entropy_loss.1} parent=5 // pred_check
        _
      $region26: #{cross_entropy_loss.1} parent=5 // pred_check_branch
        %138 = sbr.rel (%p135) target = $region28
      $region27: #{cross_entropy_loss.1} parent=5 // pred_region
        %s139 = ssub.s32 %s11, 1
        %s140 = sand.u32 %s24, 1
        %s141 = scalar_lea.sflag [#allocation3], %s140
        %s142 = sand.u32 %s24, 1
        %s143 = smul.addr %s142, 8
        %s144 = scalar_lea.vmem [#allocation2], %s143
        // Predicated region
        $region29: #{cross_entropy_loss.1} parent=27 // pred_check
          %p145 = pneg %p37
        $region30: #{cross_entropy_loss.1} parent=27 // pred_check_branch
          %147 = sbr.rel (%p145) target = $region32
        $region31: #{cross_entropy_loss.1} parent=27 // pred_region
          %149 = dma.done %s141, 128
        $region32: #{cross_entropy_loss.1} parent=27 // pred_fallthru
          _
        %s150 = sand.u32 %s24, 1
        %s151 = scalar_lea.sflag [#allocation3], %s150
        %s152 = sand.u32 %s24, 1
        %s153 = smul.addr %s152, 8
        %s154 = scalar_lea.vmem [#allocation2], %s153
        %p155 = pneg %p37
        %p156 = pneg %p34
        %p157 = scmp.lt.s32.totalorder %s16, 1
        %s158 = scalar_select %p157, %s16, 1
        %s159 = scalar_lea.vmem %s1, %s158
        %p160 = pneg %p63
        %p161 = pneg %p60
        %p162 = pneg %p89
        %p163 = pneg %p86
        %p164 = scmp.lt.s32.totalorder %s16, 1
        %s165 = scalar_select %p164, %s16, 1
        %s166 = scalar_lea.vmem %s2, %s165
        %p167 = scmp.lt.s32.totalorder %s16, 1
        %s168 = scalar_select %p167, %s16, 1
        %s169 = scalar_lea.vmem %s1, %s168
        %p170 = scmp.lt.s32.totalorder %s16, 1
        %s171 = scalar_select %p170, %s16, 1
        %s172 = scalar_lea.vmem %s2, %s171
        %v173 = vld [vmem:[%s144] sm:$0xff]
        %v174 = vld [vmem:[%s169] sm:$0x1]
        %175 = vxpose.xlu0.b32.start [1/16] %v174, 128
        %176 = vxpose.xlu0.b32.cont [2/16] 0, 128
        %177 = vxpose.xlu0.b32.cont [3/16] 0, 128
        %178 = vxpose.xlu0.b32.cont [4/16] 0, 128
        %179 = vxpose.xlu0.b32.cont [5/16] 0, 128
        %180 = vxpose.xlu0.b32.cont [6/16] 0, 128
        %181 = vxpose.xlu0.b32.cont [7/16] 0, 128
        %182 = vxpose.xlu0.b32.cont [8/16] 0, 128
        %183 = vxpose.xlu0.b32.cont [9/16] 0, 128
        %184 = vxpose.xlu0.b32.cont [10/16] 0, 128
        %185 = vxpose.xlu0.b32.cont [11/16] 0, 128
        %186 = vxpose.xlu0.b32.cont [12/16] 0, 128
        %187 = vxpose.xlu0.b32.cont [13/16] 0, 128
        %188 = vxpose.xlu0.b32.cont [14/16] 0, 128
        %189 = vxpose.xlu0.b32.cont [15/16] 0, 128
        %190 = vxpose.xlu0.b32.end [16/16] 0, 128
        %v191 = vpop.trf.xlu0
        %v192 = vpop.trf.xlu0
        %v193 = vpop.trf.xlu0
        %v194 = vpop.trf.xlu0
        %v195 = vpop.trf.xlu0
        %v196 = vpop.trf.xlu0
        %v197 = vpop.trf.xlu0
        %v198 = vpop.trf.xlu0
        %v199 = vpop.trf.xlu0
        %v200 = vpop.trf.xlu0
        %v201 = vpop.trf.xlu0
        %v202 = vpop.trf.xlu0
        %v203 = vpop.trf.xlu0
        %v204 = vpop.trf.xlu0
        %v205 = vpop.trf.xlu0
        %v206 = vpop.trf.xlu0
        %vm207 = vcmask 261120
        %v208 = vsel %vm207, %v173, -inf
        %209 = vmax.xlane.f32.xlu0 %v208
        %v210 = vpop.xlane.xlu0 %209
        %v211 = vsub.f32 %v173, %v210
        %v212 = vmul.f32 %v211, 1.442695
        %v213 = vpow.pop %v212
        %v214 = vsel %vm207, %v213, 0.0
        %215 = vadd.xlane.f32.xlu0 %v214
        %v216 = vpop.xlane.xlu0 %215
        %v217 = vlog2.pop %v216
        %v218 = vmul.f32 %v217, 0.6931472
        %v219 = vlaneseq
        %v220 = vand.u32 %v219, 127
        %221 = vset.pattern.permute.xlu0 0
        %222 = vperm.xlu0 %221, %v191
        %v223 = vpop.permute.xlu0 %222
        %vm224 = vcmp.eq.s32.totalorder %v220, %v223
        %v225 = vsel %vm224, %v211, 0.0
        %v226 = vsel %vm207, %v225, 0.0
        %227 = vadd.xlane.f32.xlu0 %v226
        %v228 = vpop.xlane.xlu0 %227
        %v229 = vsub.f32 %v218, %v228
        %v230 = vlaneseq
        %v231 = vshrl.u32 %v230, 7
        %s232 = smul.u32 %s16, 8
        %v233 = vstv %s232
        %v234 = vadd.s32 %v231, %v233
        %vm235 = vcmp.lt.s32.totalorder %v234, 16
        %v236 = vsel %vm235, %v229, 0.0
        %237 = vxpose.xlu0.b32.start [1/16] %v236, 128
        %238 = vxpose.xlu0.b32.cont [2/16] 0.0, 128
        %239 = vxpose.xlu0.b32.cont [3/16] 0.0, 128
        %240 = vxpose.xlu0.b32.cont [4/16] 0.0, 128
        %241 = vxpose.xlu0.b32.cont [5/16] 0.0, 128
        %242 = vxpose.xlu0.b32.cont [6/16] 0.0, 128
        %243 = vxpose.xlu0.b32.cont [7/16] 0.0, 128
        %244 = vxpose.xlu0.b32.cont [8/16] 0.0, 128
        %245 = vxpose.xlu0.b32.cont [9/16] 0.0, 128
        %246 = vxpose.xlu0.b32.cont [10/16] 0.0, 128
        %247 = vxpose.xlu0.b32.cont [11/16] 0.0, 128
        %248 = vxpose.xlu0.b32.cont [12/16] 0.0, 128
        %249 = vxpose.xlu0.b32.cont [13/16] 0.0, 128
        %250 = vxpose.xlu0.b32.cont [14/16] 0.0, 128
        %251 = vxpose.xlu0.b32.cont [15/16] 0.0, 128
        %252 = vxpose.xlu0.b32.end [16/16] 0.0, 128
        %v253 = vpop.trf.xlu0
        %v254 = vpop.trf.xlu0
        %v255 = vpop.trf.xlu0
        %v256 = vpop.trf.xlu0
        %v257 = vpop.trf.xlu0
        %v258 = vpop.trf.xlu0
        %v259 = vpop.trf.xlu0
        %v260 = vpop.trf.xlu0
        %v261 = vpop.trf.xlu0
        %v262 = vpop.trf.xlu0
        %v263 = vpop.trf.xlu0
        %v264 = vpop.trf.xlu0
        %v265 = vpop.trf.xlu0
        %v266 = vpop.trf.xlu0
        %v267 = vpop.trf.xlu0
        %v268 = vpop.trf.xlu0
        %vm269 = vcmask 57344
        %270 = vst.msk [vmem:[%s172] sm:$0x1] %vm269, %v253
        %p271 = scmp.lt.s32.totalorder %s16, 1
        %s272 = scalar_select %p271, %s16, 1
        %s273 = scalar_lea.vmem %s2, %s272
        // Predicated region
        $region33: #{cross_entropy_loss.1} parent=27 // pred_check
          %p274 = pneg %p86
        $region34: #{cross_entropy_loss.1} parent=27 // pred_check_branch
          %276 = sbr.rel (%p274) target = $region36
        $region35: #{cross_entropy_loss.1} parent=27 // pred_region
          _
        $region36: #{cross_entropy_loss.1} parent=27 // pred_fallthru
          _
      $region28: #{cross_entropy_loss.1} parent=5 // pred_fallthru
        _
      %p277 = scmp.le.s32.totalorder 2, %s11
      // Predicated region
      $region37: #{cross_entropy_loss.1} parent=5 // pred_check
        %p278 = pneg %p277
      $region38: #{cross_entropy_loss.1} parent=5 // pred_check_branch
        %280 = sbr.rel (%p278) target = $region40
      $region39: #{cross_entropy_loss.1} parent=5 // pred_region
        %s281 = ssub.s32 %s11, 2
        // Predicated region
        $region41: #{cross_entropy_loss.1} parent=39 // pred_check
          %p282 = pneg %p92
        $region42: #{cross_entropy_loss.1} parent=39 // pred_check_branch
          %284 = sbr.rel (%p282) target = $region44
        $region43: #{cross_entropy_loss.1} parent=39 // pred_region
          %p285 = scmp.lt.s32.totalorder %s17, 1
          %s286 = scalar_select %p285, %s17, 1
          %s287 = scalar_lea.vmem %s2, %s286
        $region44: #{cross_entropy_loss.1} parent=39 // pred_fallthru
          _
      $region40: #{cross_entropy_loss.1} parent=5 // pred_fallthru
        _
    $region6: #{cross_entropy_loss.1} parent=1 // loop_footer
      %s15 = sadd.s32 1, %s11
    $region7: #{cross_entropy_loss.1} parent=1 // loop_footer_branch
      %10 = sbr.rel target = $region3
    $region8: #{cross_entropy_loss.1} parent=1 // loop_exit
      _
    %288 = vsyncpa [#allocation3], 1
    %s289 = scalar_lea.sflag [#allocation3], 1
    %290 = vsyncpa %s289, 1

</llo_original>
